<compile_context>
chip_gen: v6e
topology: v6e:2x2x1
jax: 0.10.0
libtpu: 0.0.40
codegen_flags: <defaults>
</compile_context>

<pallas_src>
import functools

import jax
import jax.numpy as jnp
from jax.experimental import pallas as pl
from jax.experimental.pallas import tpu as pltpu

BN_EPS = 1e-5
VMEM_LIMIT_BYTES = 32 * 1024 * 1024   # safe on v5e/v6e (128 MiB) and v7x (64 MiB)


# ----------------------------------------------------------------------------
# Tile pickers (static, trace-time)
# ----------------------------------------------------------------------------
def _pick_row_tile(m, t_max=4096):
    """Largest multiple-of-8 divisor of m <= t_max with grid >= 4 (>=2 for small m)."""
    if m % 8 != 0:
        return m
    grids = (2,) if m <= 1024 else (4, 2)
    for g in grids:
        cap = min(t_max, m // g)
        best = 0
        for t in range(8, cap + 1, 8):
            if m % t == 0:
                best = t
        if best:
            return best
    return m


def _pick_lane_tile(m, t_max=8192):
    """Largest multiple-of-128 divisor of m <= t_max with grid >= 4 (else >=2, else 1)."""
    if m % 128 != 0:
        return m
    for g in (4, 2):
        cap = min(t_max, m // g)
        best = 0
        for t in range(128, cap + 1, 128):
            if m % t == 0:
                best = t
        if best:
            return best
    return m


def _choose_subpixel_domain(hu_need, wu_need, hu_max, wu_max, n):
    """Smallest (Hu, Wu) >= needed whose flattened M tiles well (grid 4..16, tile>=512)."""
    best = None
    for hu in range(hu_need, hu_max + 1):
        for wu in range(wu_need, wu_max + 1):
            m = n * hu * wu
            if m % 8:
                continue
            tm = _pick_row_tile(m)
            g = m // tm
            if not (4 <= g <= 16 and tm >= 512):
                continue
            if best is None or m < best[0]:
                best = (m, hu, wu)
    return (best[1], best[2]) if best else (hu_max, wu_max)


# ----------------------------------------------------------------------------
# Encoder kernel:  o = LeakyReLU((W @ A) * scale + shift)       (per-row affine)
#   W: (Cout, 9*Cin) bf16   A: (9*Cin, M) bf16   out: (Cout, M) bf16  (lane-dense)
# ----------------------------------------------------------------------------
def _enc_matmul_kernel(w_ref, a_ref, scale_ref, shift_ref, o_ref):
    acc = jnp.dot(w_ref[...], a_ref[...], preferred_element_type=jnp.float32)
    y = acc * scale_ref[...] + shift_ref[...]
    y = jnp.where(y >= 0, y, 0.1 * y)
    o_ref[...] = y.astype(o_ref.dtype)


def enc_matmul(wmat, a, scale, shift):
    Cout, K = wmat.shape
    _, M = a.shape
    tn = _pick_lane_tile(M)
    return pl.pallas_call(
        _enc_matmul_kernel,
        out_shape=jax.ShapeDtypeStruct((Cout, M), jnp.bfloat16),
        grid_spec=pltpu.PrefetchScalarGridSpec(
            num_scalar_prefetch=0,
            grid=(M // tn,),
            in_specs=[pl.BlockSpec((Cout, K), lambda i: (0, 0)),
                      pl.BlockSpec((K, tn), lambda i: (0, i)),
                      pl.BlockSpec((Cout, 1), lambda i: (0, 0)),
                      pl.BlockSpec((Cout, 1), lambda i: (0, 0))],
            out_specs=pl.BlockSpec((Cout, tn), lambda i: (0, i)),
        ),
        compiler_params=pltpu.CompilerParams(
            dimension_semantics=("parallel",),
            vmem_limit_bytes=VMEM_LIMIT_BYTES),
    )(wmat, a, scale, shift)


def enc_conv_block(xc, wmat, scale, shift):
    """Conv2d(k=3, s=2, p=1, bias=False) + folded BN + LeakyReLU(0.1).
    xc: (Cin, N, H, W) bf16 channel-major; returns (Cout, N, Ho, Wo) bf16."""
    C, N, H, W = xc.shape
    Cout = wmat.shape[0]
    Ho, Wo = (H - 1) // 2 + 1, (W - 1) // 2 + 1
    xp = jnp.pad(xc, ((0, 0), (0, 0), (1, 1), (1, 1)))
    # TODO(synk): assemble these 9 strided taps inside the kernel from a
    # VMEM-resident padded input instead of materializing (9*Cin, M) in HBM.
    taps = [xp[:, :, i:i + 2 * Ho:2, j:j + 2 * Wo:2]
            for i in range(3) for j in range(3)]
    a = jnp.concatenate(taps, axis=0).reshape(9 * C, N * Ho * Wo)
    y = enc_matmul(wmat, a, scale, shift)
    return y.reshape(Cout, N, Ho, Wo)


# ----------------------------------------------------------------------------
# Decoder kernel:  o = epi((A @ B) * scale + shift)              (per-col affine)
# ----------------------------------------------------------------------------
def _dec_matmul_kernel(*refs, leaky_slope, has_mask):
    if has_mask:
        a_ref, b_ref, scale_ref, shift_ref, mask_ref, o_ref = refs
    else:
        a_ref, b_ref, scale_ref, shift_ref, o_ref = refs
    acc = jnp.dot(a_ref[...], b_ref[...], preferred_element_type=jnp.float32)
    y = acc * scale_ref[...] + shift_ref[...]
    if leaky_slope is not None:
        y = jnp.where(y >= 0, y, leaky_slope * y)
    if has_mask:
        # numerically-safe sigmoid on the EUP/approx-reciprocal path (review item)
        sig = pl.reciprocal(1.0 + jnp.exp(-jnp.maximum(y, -30.0)), approx=True)
        sig = jnp.clip(sig, 0.0, 1.0)
        y = jnp.where(mask_ref[...] > 0.5, sig, y)
    o_ref[...] = y.astype(o_ref.dtype)


def dec_matmul(a, b, scale, shift, *, leaky_slope, sigmoid_mask=None,
               out_dtype=jnp.bfloat16):
    M, K = a.shape
    _, Nc = b.shape
    tm = _pick_row_tile(M)
    inputs = [a, b, scale, shift]
    in_specs = [pl.BlockSpec((tm, K), lambda i: (i, 0)),
                pl.BlockSpec((K, Nc), lambda i: (0, 0)),
                pl.BlockSpec((1, Nc), lambda i: (0, 0)),
                pl.BlockSpec((1, Nc), lambda i: (0, 0))]
    if sigmoid_mask is not None:
        inputs.append(sigmoid_mask)
        in_specs.append(pl.BlockSpec((1, Nc), lambda i: (0, 0)))
    kern = functools.partial(_dec_matmul_kernel, leaky_slope=leaky_slope,
                             has_mask=sigmoid_mask is not None)
    return pl.pallas_call(
        kern,
        out_shape=jax.ShapeDtypeStruct((M, Nc), out_dtype),
        grid_spec=pltpu.PrefetchScalarGridSpec(
            num_scalar_prefetch=0,
            grid=(M // tm,),
            in_specs=in_specs,
            out_specs=pl.BlockSpec((tm, Nc), lambda i: (i, 0)),
        ),
        compiler_params=pltpu.CompilerParams(
            dimension_semantics=("parallel",),
            vmem_limit_bytes=VMEM_LIMIT_BYTES),
    )(*inputs)


# ----------------------------------------------------------------------------
# ConvTranspose2d(k=3, s=2) via sub-pixel decomposition:
#   Yfull(2u+p, 2v+q) = sum_{i%2==p, j%2==q} x(u - i//2, v - j//2) @ W[:, :, i, j]
# => one matmul: [4 shifted input slabs along K] @ [4 output-parity planes along N]
# ----------------------------------------------------------------------------
def _dec_weight_big(w):
    # w: torch ConvTranspose2d layout (Cin, Cout, 3, 3) -> (4*Cin, 4*Cout)
    Cin, Cout = w.shape[0], w.shape[1]
    zeros = jnp.zeros((Cin, Cout), w.dtype)
    rows = []
    for rs in (0, 1):
        for cs in (0, 1):
            cols = []
            for p in (0, 1):
                for q in (0, 1):
                    i, j = 2 * (1 - rs) + p, 2 * (1 - cs) + q
                    cols.append(w[:, :, i, j] if (i < 3 and j < 3) else zeros)
            rows.append(jnp.concatenate(cols, axis=1))       # (Cin, 4*Cout)
    return jnp.concatenate(rows, axis=0)                     # (4*Cin, 4*Cout)


def conv_transpose2d_subpixel(x, wbig, scale4, shift4, *, padding, leaky_slope,
                              sigmoid_mask=None, out_dtype=jnp.bfloat16,
                              crop_hw=None):
    """x: (N, H, W, Cin) bf16 NHWC; wbig: (4*Cin, 4*Cout) bf16; scale4/shift4: (1, 4*Cout).
    crop_hw fuses a trailing crop (Trim) by restricting the computed sub-pixel domain."""
    N, H, W, Cin = x.shape
    Cout = wbig.shape[1] // 4
    Hout = 2 * H + 1 - 2 * padding
    Wout = 2 * W + 1 - 2 * padding
    if crop_hw is not None:
        Hout, Wout = min(Hout, crop_hw[0]), min(Wout, crop_hw[1])
        hu_need = (padding + Hout - 1) // 2 + 1
        wu_need = (padding + Wout - 1) // 2 + 1
        Hu, Wu = _choose_subpixel_domain(hu_need, wu_need, H + 1, W + 1, N)
    else:
        Hu, Wu = H + 1, W + 1

    # TODO(synk): derive these slabs in-kernel from the previous layer's
    # parity-separated output to avoid the interleave/crop/re-slab HBM traffic.
    xp = jnp.pad(x, ((0, 0), (1, 1), (1, 1), (0, 0)))
    slabs = [xp[:, rs:rs + Hu, cs:cs + Wu, :] for rs in (0, 1) for cs in (0, 1)]
    a = jnp.concatenate(slabs, axis=-1).reshape(N * Hu * Wu, 4 * Cin)

    y = dec_matmul(a, wbig, scale4, shift4, leaky_slope=leaky_slope,
                   sigmoid_mask=sigmoid_mask, out_dtype=out_dtype)   # (M, 4*Cout)

    # interleave the 4 parity planes: columns are ordered (p, q, cout)
    y = y.reshape(N, Hu, Wu, 2, 2, Cout)
    y = jnp.transpose(y, (0, 1, 3, 2, 4, 5)).reshape(N, 2 * Hu, 2 * Wu, Cout)
    return y[:, padding:padding + Hout, padding:padding + Wout, :]


# ----------------------------------------------------------------------------
# Fused latent path: z_mean / z_log_var matmuls + reparameterize + Linear(200->4032)
# in ONE pallas_call (both weight sets VMEM-resident, M = batch).
# ----------------------------------------------------------------------------
def _latent_kernel(flat_ref, eps_ref, wm_ref, bm_ref, wl_ref, bl_ref, wd_ref, bd_ref,
                   h_ref, zm_ref, zlv_ref):
    flat = flat_ref[...]
    zm = jnp.dot(flat, wm_ref[...], preferred_element_type=jnp.float32) + bm_ref[...]
    zlv = jnp.dot(flat, wl_ref[...], preferred_element_type=jnp.float32) + bl_ref[...]
    z = zm + eps_ref[...] * jnp.exp(0.5 * zlv)
    h = jnp.dot(z.astype(jnp.bfloat16), wd_ref[...],
                preferred_element_type=jnp.float32) + bd_ref[...]
    h_ref[...] = h.astype(h_ref.dtype)
    zm_ref[...] = zm
    zlv_ref[...] = zlv


def latent_block(flat, eps, pk):
    N = flat.shape[0]
    D, Z = pk["w_mean"].shape            # (4032, 200)
    Hd = pk["w_dec"].shape[1]            # 4032
    in_specs = [
        pl.BlockSpec((N, D), lambda i: (0, 0)),
        pl.BlockSpec((N, Z), lambda i: (0, 0)),
        pl.BlockSpec((D, Z), lambda i: (0, 0)),
        pl.BlockSpec((1, Z), lambda i: (0, 0)),
        pl.BlockSpec((D, Z), lambda i: (0, 0)),
        pl.BlockSpec((1, Z), lambda i: (0, 0)),
        pl.BlockSpec((Z, Hd), lambda i: (0, 0)),
        pl.BlockSpec((1, Hd), lambda i: (0, 0)),
    ]
    out_specs = [
        pl.BlockSpec((N, Hd), lambda i: (0, 0)),
        pl.BlockSpec((N, Z), lambda i: (0, 0)),
        pl.BlockSpec((N, Z), lambda i: (0, 0)),
    ]
    return pl.pallas_call(
        _latent_kernel,
        out_shape=(jax.ShapeDtypeStruct((N, Hd), jnp.bfloat16),
                   jax.ShapeDtypeStruct((N, Z), jnp.float32),
                   jax.ShapeDtypeStruct((N, Z), jnp.float32)),
        grid_spec=pltpu.PrefetchScalarGridSpec(
            num_scalar_prefetch=0, grid=(1,),
            in_specs=in_specs, out_specs=out_specs),
        compiler_params=pltpu.CompilerParams(
            dimension_semantics=("arbitrary",),
            vmem_limit_bytes=VMEM_LIMIT_BYTES),
    )(flat.astype(jnp.bfloat16), eps.astype(jnp.float32),
      pk["w_mean"], pk["b_mean"], pk["w_lvar"], pk["b_lvar"],
      pk["w_dec"], pk["b_dec"])


# ----------------------------------------------------------------------------
# Deterministic parameter init (torch layouts) + one-time packing
# ----------------------------------------------------------------------------
def init_params(key, out_ch=5):
    ks = iter(jax.random.split(key, 64))

    def nrm(shape, fan_in, s=1.0):
        return (s * jax.random.normal(next(ks), shape, jnp.float32)
                / jnp.sqrt(float(fan_in))).astype(jnp.float32)

    def bn(c):
        return (1.0 + 0.1 * jax.random.normal(next(ks), (c,), jnp.float32),          # gamma
                0.1 * jax.random.normal(next(ks), (c,), jnp.float32),                # beta
                0.1 * jax.random.normal(next(ks), (c,), jnp.float32),                # running_mean
                1.0 + 0.1 * jnp.abs(jax.random.normal(next(ks), (c,), jnp.float32)))  # running_var

    p = {}
    enc_ch = [(3, 32), (32, 64), (64, 64), (64, 64), (64, 64)]
    for i, (cin, cout) in enumerate(enc_ch):
        p[f"enc{i}_w"] = nrm((cout, cin, 3, 3), cin * 9)      # Conv2d bias=False
        p[f"enc{i}_bn"] = bn(cout)

    p["z_mean_w"] = nrm((200, 4032), 4032)
    p["z_mean_b"] = 0.01 * jax.random.normal(next(ks), (200,), jnp.float32)
    p["z_log_var_w"] = nrm((200, 4032), 4032, s=0.1)
    p["z_log_var_b"] = 0.01 * jax.random.normal(next(ks), (200,), jnp.float32)

    p["dec_lin_w"] = nrm((4032, 200), 200)
    p["dec_lin_b"] = 0.01 * jax.random.normal(next(ks), (4032,), jnp.float32)

    dec_ch = [(64, 64), (64, 64), (64, 64), (64, 32), (32, out_ch)]
    for i, (cin, cout) in enumerate(dec_ch):
        p[f"dec{i}_w"] = nrm((cin, cout, 3, 3), cin * 9)      # ConvTranspose2d weight
        p[f"dec{i}_b"] = 0.01 * jax.random.normal(next(ks), (cout,), jnp.float32)
        if i < 4:
            p[f"dec{i}_bn"] = bn(cout)
    return p


def pack_params(p, out_ch=5):
    """One-time weight preprocessing (hoisted out of the jitted forward)."""
    f = {}
    for i in range(5):
        w = p[f"enc{i}_w"]
        cout = w.shape[0]
        g, beta, m, v = p[f"enc{i}_bn"]
        scale = g * jax.lax.rsqrt(v + BN_EPS)
        shift = beta - m * scale
        f[f"enc{i}_w"] = jnp.transpose(w, (0, 2, 3, 1)).reshape(cout, -1).astype(jnp.bfloat16)
        f[f"enc{i}_scale"] = scale.reshape(cout, 1).astype(jnp.float32)
        f[f"enc{i}_shift"] = shift.reshape(cout, 1).astype(jnp.float32)

    f["w_mean"] = p["z_mean_w"].T.astype(jnp.bfloat16)        # (4032, 200)
    f["b_mean"] = p["z_mean_b"].reshape(1, -1).astype(jnp.float32)
    f["w_lvar"] = p["z_log_var_w"].T.astype(jnp.bfloat16)
    f["b_lvar"] = p["z_log_var_b"].reshape(1, -1).astype(jnp.float32)
    f["w_dec"] = p["dec_lin_w"].T.astype(jnp.bfloat16)        # (200, 4032)
    f["b_dec"] = p["dec_lin_b"].reshape(1, -1).astype(jnp.float32)

    has_bn = [True, True, True, True, False]
    for i in range(5):
        w = p[f"dec{i}_w"]
        cout = w.shape[1]
        bias = p[f"dec{i}_b"]
        if has_bn[i]:
            g, beta, m, v = p[f"dec{i}_bn"]
            scale = g * jax.lax.rsqrt(v + BN_EPS)
            shift = beta - m * scale + bias * scale           # BN(convT + bias) folded
        else:
            scale = jnp.ones((cout,), jnp.float32)
            shift = bias
        f[f"dec{i}_w"] = _dec_weight_big(w).astype(jnp.bfloat16)
        f[f"dec{i}_scale"] = jnp.tile(scale, 4).reshape(1, -1).astype(jnp.float32)
        f[f"dec{i}_shift"] = jnp.tile(shift, 4).reshape(1, -1).astype(jnp.float32)
    sig = (jnp.arange(out_ch) >= 2).astype(jnp.float32)
    f["dec4_sigmask"] = jnp.tile(sig, 4).reshape(1, -1)
    return f


# ----------------------------------------------------------------------------
# VAE forward (matches VAE.forward with returnZ=False, inference-mode BN/Dropout)
# ----------------------------------------------------------------------------
def vae_forward(pk, x_nchw, truth_masks, eps_key):
    N = x_nchw.shape[0]

    # ---- encoder (channel-major, lane-dense outputs; Dropout2d = identity in eval)
    xc = jnp.transpose(x_nchw.astype(jnp.bfloat16), (1, 0, 2, 3))   # (C, N, H, W)
    for i in range(5):
        xc = enc_conv_block(xc, pk[f"enc{i}_w"], pk[f"enc{i}_scale"], pk[f"enc{i}_shift"])
    C, _, Hs, Ws = xc.shape                                          # (64, N, 7, 9)
    flat = jnp.transpose(xc, (1, 0, 2, 3)).reshape(N, C * Hs * Ws)   # torch NCHW Flatten

    # ---- fused latent path (z stats + reparameterize + Linear(200->4032))
    eps = jax.random.normal(eps_key, (N, pk["w_mean"].shape[1]), jnp.float32)
    h, z_mean, z_log_var = latent_block(flat, eps, pk)

    x = jnp.transpose(h.reshape(N, 64, 7, 9), (0, 2, 3, 1))          # NHWC (N, 7, 9, 64)

    # ---- decoder ConvTranspose stack (BN + LeakyReLU fused; last layer fuses
    #      bias + channel-masked sigmoid + Trim)
    for i in range(4):
        pad = 0 if i < 2 else 1
        x = conv_transpose2d_subpixel(
            x, pk[f"dec{i}_w"], pk[f"dec{i}_scale"], pk[f"dec{i}_shift"],
            padding=pad, leaky_slope=0.1, out_dtype=jnp.bfloat16)
    x = conv_transpose2d_subpixel(
        x, pk["dec4_w"], pk["dec4_scale"], pk["dec4_shift"],
        padding=1, leaky_slope=None, sigmoid_mask=pk["dec4_sigmask"],
        out_dtype=jnp.float32, crop_hw=(216, 288))                   # Trim fused

    x = jnp.transpose(x, (0, 3, 1, 2))                               # NCHW (N, 5, 216, 288)
    predicted_masks = x[:, :2, :, :]
    generated_images = x[:, 2:, :, :]                                # sigmoid already applied
    return generated_images, predicted_masks, truth_masks, (z_mean, z_log_var)


# ----------------------------------------------------------------------------
# Correctness checks of the building blocks against lax references (bf16 inputs,
# f32 accumulation on both sides; loose tolerance catches layout/index bugs).
# ----------------------------------------------------------------------------
def _check_building_blocks():
    key = jax.random.PRNGKey(1)
    ks = jax.random.split(key, 8)

    # Conv2d(k=3, s=2, p=1, bias=False) + affine + LeakyReLU
    N, Cin, Cout, H, W = 2, 8, 16, 12, 16
    x = jax.random.normal(ks[0], (N, Cin, H, W), jnp.float32)
    w = 0.2 * jax.random.normal(ks[1], (Cout, Cin, 3, 3), jnp.float32)
    scale = 1.0 + 0.1 * jax.random.normal(ks[2], (Cout,), jnp.float32)
    shift = 0.1 * jax.random.normal(ks[3], (Cout,), jnp.float32)
    xb = x.astype(jnp.bfloat16).astype(jnp.float32)
    wb = w.astype(jnp.bfloat16).astype(jnp.float32)
    wmat = jnp.transpose(wb, (0, 2, 3, 1)).reshape(Cout, -1).astype(jnp.bfloat16)
    got = enc_conv_block(jnp.transpose(xb.astype(jnp.bfloat16), (1, 0, 2, 3)),
                         wmat, scale.reshape(-1, 1), shift.reshape(-1, 1))
    got = jnp.transpose(got, (1, 0, 2, 3)).astype(jnp.float32)
    ref = jax.lax.conv_general_dilated(xb, wb, (2, 2), ((1, 1), (1, 1)),
                                       dimension_numbers=("NCHW", "OIHW", "NCHW"))
    ref = ref * scale[None, :, None, None] + shift[None, :, None, None]
    ref = jnp.where(ref >= 0, ref, 0.1 * ref)
    err = float(jnp.max(jnp.abs(got - ref)))
    assert err < 0.2, f"encoder conv block mismatch: {err}"

    # ConvTranspose2d(k=3, s=2, padding=1) + bias
    N, Cin, Cout, H, W, pad = 2, 8, 8, 5, 6, 1
    x = jax.random.normal(ks[4], (N, Cin, H, W), jnp.float32)
    w = 0.2 * jax.random.normal(ks[5], (Cin, Cout, 3, 3), jnp.float32)
    bias = 0.1 * jax.random.normal(ks[6], (Cout,), jnp.float32)
    xb = x.astype(jnp.bfloat16).astype(jnp.float32)
    wb = w.astype(jnp.bfloat16).astype(jnp.float32)
    wbig = _dec_weight_big(wb).astype(jnp.bfloat16)
    got = conv_transpose2d_subpixel(
        jnp.transpose(xb.astype(jnp.bfloat16), (0, 2, 3, 1)), wbig,
        jnp.tile(jnp.ones((Cout,), jnp.float32), 4).reshape(1, -1),
        jnp.tile(bias, 4).reshape(1, -1),
        padding=pad, leaky_slope=None, out_dtype=jnp.float32)
    got = jnp.transpose(got, (0, 3, 1, 2))
    ref = jax.lax.conv_general_dilated(
        xb, jnp.flip(wb, (2, 3)), (1, 1),
        ((2 - pad, 2 - pad), (2 - pad, 2 - pad)), lhs_dilation=(2, 2),
        dimension_numbers=("NCHW", "IOHW", "NCHW"))
    ref = ref + bias[None, :, None, None]
    err = float(jnp.max(jnp.abs(got - ref)))
    assert err < 0.2, f"conv-transpose block mismatch: {err}"


# ----------------------------------------------------------------------------
if __name__ == "__main__":
    key = jax.random.PRNGKey(0)
    k_param, k_x, k_mask, k_eps = jax.random.split(key, 4)

    _check_building_blocks()

    params = init_params(k_param, out_ch=5)
    packed = pack_params(params, out_ch=5)

    # Input spatial size is fixed by the module (Flatten -> Linear(4032): 224x288)
    x = jax.random.normal(k_x, (2, 3, 224, 288), jnp.float32)
    truth_masks = jax.random.normal(k_mask, (2, 2, 216, 288), jnp.float32)

    fwd = jax.jit(vae_forward)
    gen, masks, tmask, (z_mu, z_lv) = fwd(packed, x, truth_masks, k_eps)
    jax.block_until_ready((gen, masks, tmask, z_mu, z_lv))

    assert gen.shape == (2, 3, 216, 288)
    assert masks.shape == (2, 2, 216, 288)
    assert z_mu.shape == (2, 200) and z_lv.shape == (2, 200)
    assert bool(jnp.all(jnp.isfinite(gen))) and bool(jnp.all(jnp.isfinite(masks)))
    assert bool(jnp.all(gen >= 0.0)) and bool(jnp.all(gen <= 1.0))   # fused sigmoid range
    print("KERNEL_OK")
</pallas_src>

<mosaic_0001>
module attributes {stable_mosaic.version = 11 : i64} {
  func.func @_enc_matmul_kernel(%arg0: i32, %arg1: memref<16x72xbf16, #tpu.memory_space<vmem>>, %arg2: memref<72x96xbf16, #tpu.memory_space<vmem>>, %arg3: memref<16x1xf32, #tpu.memory_space<vmem>>, %arg4: memref<16x1xf32, #tpu.memory_space<vmem>>, %arg5: memref<16x96xbf16, #tpu.memory_space<vmem>>) attributes {dimension_semantics = [#tpu.dimension_semantics<parallel>], iteration_bounds = array<i64: 1>, scalar_prefetch = 0 : i64, scratch_operands = 0 : i64, tpu.core_type = #tpu.core_type<tc>, window_params = [{pipeline_mode = #tpu.pipeline_mode<synchronous>, transform_indices = @transform_0, window_bounds = array<i64: 16, 72>}, {transform_indices = @transform_1, window_bounds = array<i64: 72, 96>}, {pipeline_mode = #tpu.pipeline_mode<synchronous>, transform_indices = @transform_2, window_bounds = array<i64: 16, 1>}, {pipeline_mode = #tpu.pipeline_mode<synchronous>, transform_indices = @transform_3, window_bounds = array<i64: 16, 1>}, {transform_indices = @transform_4, window_bounds = array<i64: 16, 96>}]} {
    %c0 = arith.constant 0 : index
    %c0_0 = arith.constant 0 : index
    %0 = vector.load %arg1[%c0, %c0_0] : memref<16x72xbf16, #tpu.memory_space<vmem>>, vector<16x72xbf16>
    %c0_1 = arith.constant 0 : index
    %c0_2 = arith.constant 0 : index
    %1 = vector.load %arg2[%c0_1, %c0_2] : memref<72x96xbf16, #tpu.memory_space<vmem>>, vector<72x96xbf16>
    %cst = arith.constant dense<0.000000e+00> : vector<16x96xf32>
    %2 = tpu.matmul %0, %1, %cst {dimension_numbers = #tpu.dot_dimension_numbers<[1], [0], [0], [1], [0, 0, 1, 1], [], []>} : vector<16x72xbf16>, vector<72x96xbf16>, vector<16x96xf32> -> vector<16x96xf32>
    %c0_3 = arith.constant 0 : index
    %c0_4 = arith.constant 0 : index
    %3 = vector.load %arg3[%c0_3, %c0_4] : memref<16x1xf32, #tpu.memory_space<vmem>>, vector<16x1xf32>
    %4 = vector.broadcast %3 : vector<16x1xf32> to vector<16x96xf32>
    %5 = arith.mulf %2, %4 : vector<16x96xf32>
    %c0_5 = arith.constant 0 : index
    %c0_6 = arith.constant 0 : index
    %6 = vector.load %arg4[%c0_5, %c0_6] : memref<16x1xf32, #tpu.memory_space<vmem>>, vector<16x1xf32>
    %7 = vector.broadcast %6 : vector<16x1xf32> to vector<16x96xf32>
    %8 = arith.addf %5, %7 : vector<16x96xf32>
    %cst_7 = arith.constant 0.000000e+00 : f32
    %9 = vector.broadcast %cst_7 : f32 to vector<16x96xf32>
    %10 = arith.cmpf oge, %8, %9 : vector<16x96xf32>
    %cst_8 = arith.constant 1.000000e-01 : f32
    %11 = vector.broadcast %cst_8 : f32 to vector<16x96xf32>
    %12 = arith.mulf %11, %8 : vector<16x96xf32>
    %13 = arith.select %10, %8, %12 : vector<16x96xi1>, vector<16x96xf32>
    %14 = arith.truncf %13 : vector<16x96xf32> to vector<16x96xbf16>
    %c0_9 = arith.constant 0 : index
    %c0_10 = arith.constant 0 : index
    %15 = vector.load %arg5[%c0_9, %c0_10] : memref<16x96xbf16, #tpu.memory_space<vmem>>, vector<16x96xbf16>
    tpu.vector_store %arg5[%c0_9, %c0_10], %14 {strides = array<i32>} : memref<16x96xbf16, #tpu.memory_space<vmem>>, vector<16x96xbf16>,
    return
  }
  func.func @transform_0(%arg0: i32) -> (i32, i32) {
    %c0_i32 = arith.constant 0 : i32
    %c0_i32_0 = arith.constant 0 : i32
    %c0_i32_1 = arith.constant 0 : i32
    return %c0_i32, %c0_i32_0 : i32, i32
  }
  func.func @transform_1(%arg0: i32) -> (i32, i32) {
    %c0_i32 = arith.constant 0 : i32
    %c0_i32_0 = arith.constant 0 : i32
    return %c0_i32, %arg0 : i32, i32
  }
  func.func @transform_2(%arg0: i32) -> (i32, i32) {
    %c0_i32 = arith.constant 0 : i32
    %c0_i32_0 = arith.constant 0 : i32
    %c0_i32_1 = arith.constant 0 : i32
    return %c0_i32, %c0_i32_0 : i32, i32
  }
  func.func @transform_3(%arg0: i32) -> (i32, i32) {
    %c0_i32 = arith.constant 0 : i32
    %c0_i32_0 = arith.constant 0 : i32
    %c0_i32_1 = arith.constant 0 : i32
    return %c0_i32, %c0_i32_0 : i32, i32
  }
  func.func @transform_4(%arg0: i32) -> (i32, i32) {
    %c0_i32 = arith.constant 0 : i32
    %c0_i32_0 = arith.constant 0 : i32
    return %c0_i32, %arg0 : i32, i32
  }
}

</mosaic_0001>

<llo_original>
// kernel: tpu_custom_call.1
$region0: #{tpu_custom_call.1}
  #allocation0 [shape = 'u32[]', space=smem, size = 0x4, offset = 0x4, fixed_abs, tag = 'smem constant byte address 0x4 - core index']
  #allocation1 [shape = 'u32[144,128]{1,0:T(1,128)}', space=vmem, size = 0x12000, scoped, tag = 'internal scratch']
  %s0 = inlined_call_operand.vmem [shape: bf16[16,72], index: 0, kind: input, shape index: {}]
  %s1 = inlined_call_operand.hbm [shape: bf16[72,96], index: 1, kind: input, shape index: {}]
  %s2 = inlined_call_operand.vmem [shape: f32[16,1], index: 2, kind: input, shape index: {}]
  %s3 = inlined_call_operand.vmem [shape: f32[16,1], index: 3, kind: input, shape index: {}]
  %s4 = inlined_call_operand.hbm [shape: bf16[16,96], index: 4, kind: output, shape index: {}]
  %s5 = sld [smem:[#allocation0]]
  $region30: #{tpu_custom_call.1} parent=0
    _
  %s7 = ssub.s32 1, %s5
  %s8 = scalar_select 0, %s7, %s5
  $region1: #{tpu_custom_call.1} parent=0
    #allocation2 [shape = 'u8[18432]{0}', space=vmem, size = 0x4800, scoped, tag = 'input window, operand 1, single buffered']
    #allocation3 [shape = 's32[1]{0}', space=sflag, size = 0x4, scoped, tag = 'scoped memory for tpu_custom_call.1']
    #allocation4 [shape = 's32[1]{0}', space=sflag, size = 0x4, scoped, tag = 'scoped memory for tpu_custom_call.1']
    #allocation5 [shape = 'u8[4096]{0}', space=vmem, size = 0x1000, scoped, tag = 'output window, operand 0, single buffered']
    %9 = vsyncpa [#allocation3], 0
    %10 = vsyncpa [#allocation4], 0
    // Predicated region
    $region2: #{tpu_custom_call.1} parent=1 // pred_check
      _
    $region3: #{tpu_custom_call.1} parent=1 // pred_check_branch
      %12 = sbr.rel (0) target = $region5
    $region4: #{tpu_custom_call.1} parent=1 // pred_region
      _
    $region5: #{tpu_custom_call.1} parent=1 // pred_fallthru
      _
    // Predicated region
    $region6: #{tpu_custom_call.1} parent=1 // pred_check
      _
    $region7: #{tpu_custom_call.1} parent=1 // pred_check_branch
      %14 = sbr.rel (0) target = $region9
    $region8: #{tpu_custom_call.1} parent=1 // pred_region
      %s16 = ssub.s32 576, 576
      %17 = vsyncadd [#allocation3], %s16
      %s18 = sshll.u32 [#allocation2], 4
      %s19 = int_to_ptr.vmem [resolvable:$true] %s18
      %24 = dma.hbm_to_vmem [thread:$0]  %s1, 576, %s19, [#allocation3], 64, 64, 4
    $region9: #{tpu_custom_call.1} parent=1 // pred_fallthru
      _
    // Predicated region
    $region10: #{tpu_custom_call.1} parent=1 // pred_check
      _
    $region11: #{tpu_custom_call.1} parent=1 // pred_check_branch
      %26 = sbr.rel (0) target = $region13
    $region12: #{tpu_custom_call.1} parent=1 // pred_region
      _
    $region13: #{tpu_custom_call.1} parent=1 // pred_fallthru
      _
    // Predicated region
    $region14: #{tpu_custom_call.1} parent=1 // pred_check
      _
    $region15: #{tpu_custom_call.1} parent=1 // pred_check_branch
      %28 = sbr.rel (0) target = $region17
    $region16: #{tpu_custom_call.1} parent=1 // pred_region
      _
    $region17: #{tpu_custom_call.1} parent=1 // pred_fallthru
      _
    // Predicated region
    $region18: #{tpu_custom_call.1} parent=1 // pred_check
      _
    $region19: #{tpu_custom_call.1} parent=1 // pred_check_branch
      %30 = sbr.rel (0) target = $region21
    $region20: #{tpu_custom_call.1} parent=1 // pred_region
      %31 = dma.done [#allocation3], 576
    $region21: #{tpu_custom_call.1} parent=1 // pred_fallthru
      _
    %v33 = vld [vmem:[%s0] sm:$0xf]
    %v34 = vld [vmem:[%s0 + $0x4] sm:$0xf]
    %v35 = vld [vmem:[#allocation2] sm:$0xf]
    %v36 = vld [vmem:[#allocation2 + $0x4] sm:$0xf]
    %v37 = vld [vmem:[#allocation2 + $0x8] sm:$0xf]
    %v38 = vld [vmem:[#allocation2 + $0xc] sm:$0xf]
    %v39 = vld [vmem:[#allocation2 + $0x10] sm:$0xf]
    %v40 = vld [vmem:[#allocation2 + $0x14] sm:$0xf]
    %v41 = vld [vmem:[#allocation2 + $0x18] sm:$0xf]
    %v42 = vld [vmem:[#allocation2 + $0x1c] sm:$0xf]
    %v43 = vld [vmem:[#allocation2 + $0x20] sm:$0xf]
    %v46 = vunpack.c.l.b16 %v33
    %v47 = vunpack.c.l.b16 %v34
    %v48 = vpack.c.b16 %v47, %v46
    %v58 = vunpack.c.l.b16 %v35
    %v59 = vunpack.c.l.b16 %v36
    %v60 = vunpack.c.l.b16 %v37
    %v61 = vunpack.c.l.b16 %v38
    %v62 = vunpack.c.l.b16 %v39
    %v63 = vunpack.c.l.b16 %v40
    %v64 = vunpack.c.l.b16 %v41
    %v65 = vunpack.c.l.b16 %v42
    %v66 = vunpack.c.l.b16 %v43
    %v67 = vpack.c.b16 %v59, %v58
    %v68 = vpack.c.b16 %v61, %v60
    %v69 = vpack.c.b16 %v63, %v62
    %v70 = vpack.c.b16 %v65, %v64
    %v71 = vpack.c.b16 %v66, %v66
    %vm76 = vcmask 588800
    %v78 = vsel %vm76, %v48, 0
    %vm80 = vcmask 1043456
    %v82 = vsel %vm80, %v71, 0
    %84 = vmatprep.subr.bf16.mxu0 0
    %85 = vmatpush1.bf16.msra.mxu0 0
    %86 = vmatprep.subr.bf16.mxu0 0
    %87 = vmatpush1.bf16.msra.mxu0 0
    %88 = vmatprep.subr.bf16.mxu0 0
    %89 = vmatpush1.bf16.msra.mxu0 0
    %90 = vmatprep.subr.bf16.mxu0 0
    %91 = vmatpush1.bf16.msra.mxu0 %v82
    %92 = vmatprep.subr.bf16.mxu0 0
    %93 = vmatpush1.bf16.msra.mxu0 %v70
    %94 = vmatprep.subr.bf16.mxu0 0
    %95 = vmatpush1.bf16.msra.mxu0 %v69
    %96 = vmatprep.subr.bf16.mxu0 0
    %97 = vmatpush1.bf16.msra.mxu0 %v68
    %98 = vmatprep.subr.bf16.mxu0 0
    %99 = vmatpush1.bf16.msra.mxu0 %v67
    %100 = vmatprep.subr.bf16.mxu0 0
    %101 = vmatpush2.bf16.msra.mxu0 0
    %102 = vmatprep.subr.bf16.mxu0 0
    %103 = vmatpush2.bf16.msra.mxu0 0
    %104 = vmatprep.subr.bf16.mxu0 0
    %105 = vmatpush2.bf16.msra.mxu0 0
    %106 = vmatprep.subr.bf16.mxu0 0
    %107 = vmatpush2.bf16.msra.mxu0 0
    %108 = vmatprep.subr.bf16.mxu0 0
    %109 = vmatpush2.bf16.msra.mxu0 0
    %110 = vmatprep.subr.bf16.mxu0 0
    %111 = vmatpush2.bf16.msra.mxu0 0
    %112 = vmatprep.subr.bf16.mxu0 0
    %113 = vmatpush2.bf16.msra.mxu0 0
    %114 = vmatprep.subr.bf16.mxu0 0
    %115 = vmatpush2.bf16.msra.mxu0 0
    %116 = vmatprep.mubr.bf16.mxu0 0
    %117 = vmatmul.mubr.bf16.gmra.mxu0 %v78
    %v118 = vpop.f32.mrf.mxu0
    %v119 = vadd.f32 0.0, %v118
    %v120 = vpop.f32.mrf.mxu0
    %v121 = vpop.f32.mrf.mxu0
    %v122 = vadd.f32 0.0, %v121
    %v123 = vpop.f32.mrf.mxu0
    %124 = vdwg.mxu0
    %v125 = vld [vmem:[%s2] sm:$0xff]
    %v126 = vld [vmem:[%s2 + $0x8] sm:$0xff]
    %128 = vset.pattern.permute.xlu0 0
    %129 = vperm.xlu0 %128, %v125
    %v130 = vpop.permute.xlu0 %129
    %133 = vset.pattern.permute.xlu0 0
    %134 = vperm.xlu0 %133, %v126
    %v135 = vpop.permute.xlu0 %134
    %v137 = vmul.f32 %v119, %v130
    %v138 = vmul.f32 %v122, %v135
    %v139 = vld [vmem:[%s3] sm:$0xff]
    %v140 = vld [vmem:[%s3 + $0x8] sm:$0xff]
    %142 = vset.pattern.permute.xlu0 0
    %143 = vperm.xlu0 %142, %v139
    %v144 = vpop.permute.xlu0 %143
    %147 = vset.pattern.permute.xlu0 0
    %148 = vperm.xlu0 %147, %v140
    %v149 = vpop.permute.xlu0 %148
    %v151 = vadd.f32 %v137, %v144
    %v152 = vadd.f32 %v138, %v149
    %vm153 = vcmp.ge.f32.partialorder %v151, 0.0
    %vm154 = vcmp.ge.f32.partialorder %v152, 0.0
    %v155 = vmul.f32 %v151, 0.1
    %v156 = vmul.f32 %v152, 0.1
    %v157 = vsel %vm153, %v151, %v155
    %v158 = vsel %vm154, %v152, %v156
    %v159 = vpack.c.bf16 %v158, %v157
    %v161 = vunpack.c.l.b16 %v159
    %v162 = vunpack.c.h.b16 %v159
    %v163 = vpack.c.b16 %v161, %v161
    %v164 = vpack.c.b16 %v162, %v162
    %vm167 = vcmask 781312
    %168 = vst.msk [vmem:[#allocation5] sm:$0xf] %vm167, %v163
    %169 = vst.msk [vmem:[#allocation5 + $0x4] sm:$0xf] %vm167, %v164
    // Predicated region
    $region22: #{tpu_custom_call.1} parent=1 // pred_check
      _
    $region23: #{tpu_custom_call.1} parent=1 // pred_check_branch
      %171 = sbr.rel (0) target = $region25
    $region24: #{tpu_custom_call.1} parent=1 // pred_region
      %s173 = ssub.s32 128, 128
      %174 = vsyncadd [#allocation4], %s173
      %s175 = sshll.u32 [#allocation5], 4
      %s176 = int_to_ptr.vmem [resolvable:$true] %s175
      %181 = dma.vmem_to_hbm [thread:$0]  %s176, 128, %s4, [#allocation4], 64, 64, 4
    $region25: #{tpu_custom_call.1} parent=1 // pred_fallthru
      _
    // Predicated region
    $region26: #{tpu_custom_call.1} parent=1 // pred_check
      _
    $region27: #{tpu_custom_call.1} parent=1 // pred_check_branch
      %183 = sbr.rel (0) target = $region29
    $region28: #{tpu_custom_call.1} parent=1 // pred_region
      %184 = dma.done [#allocation4], 128
    $region29: #{tpu_custom_call.1} parent=1 // pred_fallthru
      _
    %185 = vsyncpa [#allocation3], 1
    %186 = vsyncpa [#allocation4], 1

</llo_original>
